<compile_context>
chip_gen: v7x
topology: tpu7x:2x2x1
jax: 0.10.0
libtpu: 0.0.40
codegen_flags: <defaults>
</compile_context>

<pallas_src>
import jax
import jax.numpy as jnp
from jax.experimental import pallas as pl
from jax.experimental.pallas import tpu as pltpu


def _encoder_kernel(units_ref, mask_ref, emb_ref, w1_ref, b1_ref, w2_ref,
                    b2_ref, out_ref):
    # --- per-unit soft table: softmax(relu(emb @ W1 + b1) @ W2 + b2) ---------
    # Recomputed per grid step (safe under "parallel" semantics); it is a
    # ~0.3 MFLOP MLP on resident weight blocks and hides under the output DMA.
    h = jnp.dot(emb_ref[...], w1_ref[...], preferred_element_type=jnp.float32)
    h = jnp.maximum(h + b1_ref[...], 0.0)
    logits = jnp.dot(h, w2_ref[...],
                     preferred_element_type=jnp.float32) + b2_ref[...]
    m = jnp.max(logits, axis=-1, keepdims=True)
    e = jnp.exp(logits - m)
    table = e / jnp.sum(e, axis=-1, keepdims=True)              # (V, O) f32

    # --- one-hot gather with the padding mask folded in ----------------------
    units = units_ref[...]                                      # (tm, 1) int32
    tm = units.shape[0]
    vocab = emb_ref.shape[0]
    sel = jax.lax.broadcasted_iota(jnp.int32, (tm, vocab), 1) == units
    # Exact: each row has a single nonzero (== mask), so
    # (one_hot * mask) @ table == (one_hot @ table) * mask.
    one_hot = jnp.where(sel, mask_ref[...], 0.0)                # (tm, V) f32
    # NOTE: out-of-range / negative ids produce an all-zero row; torch's
    # embedding lookup would raise instead.
    out_ref[...] = jnp.dot(one_hot, table,
                           preferred_element_type=jnp.float32)  # (tm, O)


def _row_tiling(n_rows, cap=1024):
    """Pick (tile_rows, n_steps, n_padded_rows).

    tile_rows is a multiple of 8 (sublane), capped at `cap`; the step count is
    even and >= 2 so v7x's two TensorCores get balanced work.
    """
    steps = max(2, 2 * pl.cdiv(n_rows, 2 * cap))          # even, >= 2
    tm = max(8, 8 * pl.cdiv(n_rows, 8 * steps))           # multiple of 8
    steps = max(2, 2 * pl.cdiv(pl.cdiv(n_rows, tm), 2))   # re-derive, keep even
    return int(tm), int(steps), int(tm * steps)


def soft_content_encoder(discrete_units, params, mask=None):
    """discrete_units: (B, S) int, mask: optional (B, S)."""
    emb, w1, b1, w2, b2 = params
    B, S = discrete_units.shape
    N = B * S
    V, E = emb.shape
    H = w1.shape[1]
    O = w2.shape[1]

    tm, steps, n_pad = _row_tiling(N)

    units_flat = discrete_units.reshape(N, 1).astype(jnp.int32)
    if mask is None:
        mask_flat = jnp.ones((N, 1), jnp.float32)
    else:
        mask_flat = mask.reshape(N, 1).astype(jnp.float32)
    if n_pad != N:
        # Padded tail rows use id 0 / mask 0; their outputs are sliced away.
        units_flat = jnp.pad(units_flat, ((0, n_pad - N), (0, 0)))
        mask_flat = jnp.pad(mask_flat, ((0, n_pad - N), (0, 0)))

    cost = pl.CostEstimate(
        flops=steps * (2 * V * E * H + 2 * V * H * O) + 2 * n_pad * V * O,
        transcendentals=steps * V * O,
        bytes_accessed=n_pad * (4 + 4 + 4 * O)
        + 4 * (V * E + E * H + H + H * O + O),
    )

    out = pl.pallas_call(
        _encoder_kernel,
        out_shape=jax.ShapeDtypeStruct((n_pad, O), jnp.float32),
        grid_spec=pltpu.PrefetchScalarGridSpec(
            num_scalar_prefetch=0,
            grid=(steps,),
            in_specs=[
                pl.BlockSpec((tm, 1), lambda i: (i, 0)),   # unit ids
                pl.BlockSpec((tm, 1), lambda i: (i, 0)),   # padding mask
                pl.BlockSpec((V, E), lambda i: (0, 0)),    # embedding (resident)
                pl.BlockSpec((E, H), lambda i: (0, 0)),    # W1 (resident)
                pl.BlockSpec((1, H), lambda i: (0, 0)),    # b1 (resident)
                pl.BlockSpec((H, O), lambda i: (0, 0)),    # W2 (resident)
                pl.BlockSpec((1, O), lambda i: (0, 0)),    # b2 (resident)
            ],
            out_specs=pl.BlockSpec((tm, O), lambda i: (i, 0)),
        ),
        compiler_params=pltpu.CompilerParams(
            dimension_semantics=("parallel",)),
        cost_estimate=cost,
    )(units_flat, mask_flat, emb, w1, b1, w2, b2)
    return out[:N].reshape(B, S, O)


def reference_forward(discrete_units, params, mask=None):
    emb, w1, b1, w2, b2 = params
    x = emb[discrete_units]                      # embedding lookup
    h = jnp.maximum(x @ w1 + b1[0], 0.0)
    logits = h @ w2 + b2[0]
    soft = jax.nn.softmax(logits, axis=-1)
    if mask is not None:
        soft = soft * mask[..., None].astype(soft.dtype)
    return soft


if __name__ == "__main__":
    # config: input_dim (vocab) = 64, embedding_dim = 32, hidden_dim = 32,
    #         output_dim (num_clusters) = 48, dropout inactive at inference.
    B, S = 2, 8
    V, E, H, O = 64, 32, 32, 48

    key = jax.random.PRNGKey(0)
    k_emb, k_w1, k_b1, k_w2, k_b2, k_u, k_m = jax.random.split(key, 7)

    emb = jax.random.normal(k_emb, (V, E), jnp.float32) * 0.1
    w1 = jax.random.normal(k_w1, (E, H), jnp.float32) * 0.1
    b1 = jax.random.normal(k_b1, (1, H), jnp.float32) * 0.01
    w2 = jax.random.normal(k_w2, (H, O), jnp.float32) * 0.1
    b2 = jax.random.normal(k_b2, (1, O), jnp.float32) * 0.01
    params = (emb, w1, b1, w2, b2)

    discrete_units = jax.random.randint(k_u, (B, S), 0, V, jnp.int32)
    mask = (jax.random.uniform(k_m, (B, S)) > 0.2).astype(jnp.float32)

    soft_units = jax.block_until_ready(
        soft_content_encoder(discrete_units, params, mask))

    ref = reference_forward(discrete_units, params, mask)
    assert soft_units.shape == (B, S, O)
    assert jnp.allclose(soft_units, ref, atol=1e-5, rtol=1e-5)

    # also exercise the mask=None path
    soft_nomask = jax.block_until_ready(
        soft_content_encoder(discrete_units, params, None))
    assert jnp.allclose(soft_nomask,
                        reference_forward(discrete_units, params, None),
                        atol=1e-5, rtol=1e-5)

    print("KERNEL_OK")
</pallas_src>

<mosaic_0001>
module attributes {stable_mosaic.version = 11 : i64} {
  func.func @_encoder_kernel(%arg0: i32, %arg1: memref<8x1xi32, #tpu.memory_space<vmem>>, %arg2: memref<8x1xf32, #tpu.memory_space<vmem>>, %arg3: memref<64x32xf32, #tpu.memory_space<vmem>>, %arg4: memref<32x32xf32, #tpu.memory_space<vmem>>, %arg5: memref<1x32xf32, #tpu.memory_space<vmem>>, %arg6: memref<32x48xf32, #tpu.memory_space<vmem>>, %arg7: memref<1x48xf32, #tpu.memory_space<vmem>>, %arg8: memref<8x48xf32, #tpu.memory_space<vmem>>) attributes {dimension_semantics = [#tpu.dimension_semantics<parallel>], iteration_bounds = array<i64: 2>, scalar_prefetch = 0 : i64, scratch_operands = 0 : i64, tpu.core_type = #tpu.core_type<tc>, window_params = [{transform_indices = @transform_0, window_bounds = array<i64: 8, 1>}, {transform_indices = @transform_1, window_bounds = array<i64: 8, 1>}, {pipeline_mode = #tpu.pipeline_mode<synchronous>, transform_indices = @transform_2, window_bounds = array<i64: 64, 32>}, {pipeline_mode = #tpu.pipeline_mode<synchronous>, transform_indices = @transform_3, window_bounds = array<i64: 32, 32>}, {pipeline_mode = #tpu.pipeline_mode<synchronous>, transform_indices = @transform_4, window_bounds = array<i64: 1, 32>}, {pipeline_mode = #tpu.pipeline_mode<synchronous>, transform_indices = @transform_5, window_bounds = array<i64: 32, 48>}, {pipeline_mode = #tpu.pipeline_mode<synchronous>, transform_indices = @transform_6, window_bounds = array<i64: 1, 48>}, {transform_indices = @transform_7, window_bounds = array<i64: 8, 48>}]} {
    %c0 = arith.constant 0 : index
    %c0_0 = arith.constant 0 : index
    %0 = vector.load %arg3[%c0, %c0_0] : memref<64x32xf32, #tpu.memory_space<vmem>>, vector<64x32xf32>
    %c0_1 = arith.constant 0 : index
    %c0_2 = arith.constant 0 : index
    %1 = vector.load %arg4[%c0_1, %c0_2] : memref<32x32xf32, #tpu.memory_space<vmem>>, vector<32x32xf32>
    %cst = arith.constant dense<0.000000e+00> : vector<64x32xf32>
    %2 = tpu.matmul %0, %1, %cst {dimension_numbers = #tpu.dot_dimension_numbers<[1], [0], [0], [1], [0, 0, 1, 1], [], []>} : vector<64x32xf32>, vector<32x32xf32>, vector<64x32xf32> -> vector<64x32xf32>
    %c0_3 = arith.constant 0 : index
    %c0_4 = arith.constant 0 : index
    %3 = vector.load %arg5[%c0_3, %c0_4] : memref<1x32xf32, #tpu.memory_space<vmem>>, vector<1x32xf32>
    %4 = vector.broadcast %3 : vector<1x32xf32> to vector<64x32xf32>
    %5 = arith.addf %2, %4 : vector<64x32xf32>
    %cst_5 = arith.constant 0.000000e+00 : f32
    %6 = vector.broadcast %cst_5 : f32 to vector<64x32xf32>
    %7 = arith.maximumf %5, %6 : vector<64x32xf32>
    %c0_6 = arith.constant 0 : index
    %c0_7 = arith.constant 0 : index
    %8 = vector.load %arg6[%c0_6, %c0_7] : memref<32x48xf32, #tpu.memory_space<vmem>>, vector<32x48xf32>
    %cst_8 = arith.constant dense<0.000000e+00> : vector<64x48xf32>
    %9 = tpu.matmul %7, %8, %cst_8 {dimension_numbers = #tpu.dot_dimension_numbers<[1], [0], [0], [1], [0, 0, 1, 1], [], []>} : vector<64x32xf32>, vector<32x48xf32>, vector<64x48xf32> -> vector<64x48xf32>
    %c0_9 = arith.constant 0 : index
    %c0_10 = arith.constant 0 : index
    %10 = vector.load %arg7[%c0_9, %c0_10] : memref<1x48xf32, #tpu.memory_space<vmem>>, vector<1x48xf32>
    %11 = vector.broadcast %10 : vector<1x48xf32> to vector<64x48xf32>
    %12 = arith.addf %9, %11 : vector<64x48xf32>
    %cst_11 = arith.constant dense<0xFF800000> : vector<64xf32>
    %13 = vector.multi_reduction <maximumf>, %12, %cst_11 [1] : vector<64x48xf32> to vector<64xf32>
    %14 = vector.shape_cast %13 : vector<64xf32> to vector<64x1xf32>
    %15 = vector.broadcast %14 : vector<64x1xf32> to vector<64x48xf32>
    %16 = arith.subf %12, %15 : vector<64x48xf32>
    %17 = math.exp %16 : vector<64x48xf32>
    %cst_12 = arith.constant dense<0.000000e+00> : vector<64xf32>
    %18 = vector.multi_reduction <add>, %17, %cst_12 [1] : vector<64x48xf32> to vector<64xf32>
    %19 = vector.shape_cast %18 : vector<64xf32> to vector<64x1xf32>
    %20 = vector.broadcast %19 : vector<64x1xf32> to vector<64x48xf32>
    %21 = arith.divf %17, %20 : vector<64x48xf32>
    %c0_13 = arith.constant 0 : index
    %c0_14 = arith.constant 0 : index
    %22 = vector.load %arg1[%c0_13, %c0_14] : memref<8x1xi32, #tpu.memory_space<vmem>>, vector<8x1xi32>
    %23 = tpu.iota {dimensions = array<i32: 1>} : vector<8x64xi32>
    %24 = vector.broadcast %22 : vector<8x1xi32> to vector<8x64xi32>
    %25 = arith.cmpi eq, %23, %24 : vector<8x64xi32>
    %c0_15 = arith.constant 0 : index
    %c0_16 = arith.constant 0 : index
    %26 = vector.load %arg2[%c0_15, %c0_16] : memref<8x1xf32, #tpu.memory_space<vmem>>, vector<8x1xf32>
    %cst_17 = arith.constant 0.000000e+00 : f32
    %27 = vector.shape_cast %26 : vector<8x1xf32> to vector<8x1xf32>
    %28 = vector.broadcast %27 : vector<8x1xf32> to vector<8x64xf32>
    %29 = vector.broadcast %cst_17 : f32 to vector<8x64xf32>
    %30 = arith.select %25, %28, %29 : vector<8x64xi1>, vector<8x64xf32>
    %cst_18 = arith.constant dense<0.000000e+00> : vector<8x48xf32>
    %31 = tpu.matmul %30, %21, %cst_18 {dimension_numbers = #tpu.dot_dimension_numbers<[1], [0], [0], [1], [0, 0, 1, 1], [], []>} : vector<8x64xf32>, vector<64x48xf32>, vector<8x48xf32> -> vector<8x48xf32>
    %c0_19 = arith.constant 0 : index
    %c0_20 = arith.constant 0 : index
    %32 = vector.load %arg8[%c0_19, %c0_20] : memref<8x48xf32, #tpu.memory_space<vmem>>, vector<8x48xf32>
    tpu.vector_store %arg8[%c0_19, %c0_20], %31 {strides = array<i32>} : memref<8x48xf32, #tpu.memory_space<vmem>>, vector<8x48xf32>,
    return
  }
  func.func @transform_0(%arg0: i32) -> (i32, i32) {
    %c0_i32 = arith.constant 0 : i32
    %c0_i32_0 = arith.constant 0 : i32
    return %arg0, %c0_i32 : i32, i32
  }
  func.func @transform_1(%arg0: i32) -> (i32, i32) {
    %c0_i32 = arith.constant 0 : i32
    %c0_i32_0 = arith.constant 0 : i32
    return %arg0, %c0_i32 : i32, i32
  }
  func.func @transform_2(%arg0: i32) -> (i32, i32) {
    %c0_i32 = arith.constant 0 : i32
    %c0_i32_0 = arith.constant 0 : i32
    %c0_i32_1 = arith.constant 0 : i32
    return %c0_i32, %c0_i32_0 : i32, i32
  }
  func.func @transform_3(%arg0: i32) -> (i32, i32) {
    %c0_i32 = arith.constant 0 : i32
    %c0_i32_0 = arith.constant 0 : i32
    %c0_i32_1 = arith.constant 0 : i32
    return %c0_i32, %c0_i32_0 : i32, i32
  }
  func.func @transform_4(%arg0: i32) -> (i32, i32) {
    %c0_i32 = arith.constant 0 : i32
    %c0_i32_0 = arith.constant 0 : i32
    %c0_i32_1 = arith.constant 0 : i32
    return %c0_i32, %c0_i32_0 : i32, i32
  }
  func.func @transform_5(%arg0: i32) -> (i32, i32) {
    %c0_i32 = arith.constant 0 : i32
    %c0_i32_0 = arith.constant 0 : i32
    %c0_i32_1 = arith.constant 0 : i32
    return %c0_i32, %c0_i32_0 : i32, i32
  }
  func.func @transform_6(%arg0: i32) -> (i32, i32) {
    %c0_i32 = arith.constant 0 : i32
    %c0_i32_0 = arith.constant 0 : i32
    %c0_i32_1 = arith.constant 0 : i32
    return %c0_i32, %c0_i32_0 : i32, i32
  }
  func.func @transform_7(%arg0: i32) -> (i32, i32) {
    %c0_i32 = arith.constant 0 : i32
    %c0_i32_0 = arith.constant 0 : i32
    return %arg0, %c0_i32 : i32, i32
  }
}

</mosaic_0001>

<llo_original>
// kernel: tpu_custom_call.1
$region0: #{tpu_custom_call.1}
  #allocation0 [shape = 'u32[]', space=smem, size = 0x4, offset = 0x4, fixed_abs, tag = 'smem constant byte address 0x4 - core index']
  #allocation1 [shape = 'u32[144,128]{1,0:T(1,128)}', space=vmem, size = 0x12000, scoped, tag = 'internal scratch']
  %s0 = inlined_call_operand.vmem [shape: s32[16,1], index: 0, kind: input, shape index: {}]
  %s1 = inlined_call_operand.vmem [shape: f32[16,1], index: 1, kind: input, shape index: {}]
  %s2 = inlined_call_operand.vmem [shape: f32[64,32], index: 2, kind: input, shape index: {}]
  %s3 = inlined_call_operand.vmem [shape: f32[32,32], index: 3, kind: input, shape index: {}]
  %s4 = inlined_call_operand.vmem [shape: f32[1,32], index: 4, kind: input, shape index: {}]
  %s5 = inlined_call_operand.vmem [shape: f32[32,48], index: 5, kind: input, shape index: {}]
  %s6 = inlined_call_operand.vmem [shape: f32[1,48], index: 6, kind: input, shape index: {}]
  %s7 = inlined_call_operand.hbm [shape: f32[16,48], index: 7, kind: output, shape index: {}]
  %s8 = sld [smem:[#allocation0]]
  $region61: #{tpu_custom_call.1} parent=0
    _
  %s10 = ssub.s32 1, %s8
  %s11 = scalar_select 0, %s10, %s8
  $region1: #{tpu_custom_call.1} parent=0
    #allocation2 [shape = 'u8[8192]{0}', space=vmem, size = 0x2000, scoped, tag = 'output window, operand 0']
    #allocation3 [shape = 's32[2]{0}', space=sflag, size = 0x8, scoped, tag = 'scoped memory for tpu_custom_call.1']
    %12 = vsyncpa [#allocation3], 0
    %s13 = scalar_lea.sflag [#allocation3], 1
    %14 = vsyncpa %s13, 0
    loop: start=0, step=1, limit=4
    $region2: #{tpu_custom_call.1} parent=1 // loop_pre_header
      _
    $region3: #{tpu_custom_call.1} parent=1 // loop_header
      %s16 = sphi 0, %s20
      %p17 = scmp.ge.s32.totalorder %s16, 4
      %s26 = sphi 0, %s28
      %s29 = sphi 0, %s26
      %s30 = sphi 0, %s29
      %s46 = sphi 0, %s30
      %s52 = sphi 0, %s54
      %s55 = sphi 0, %s52
      %s56 = sphi 0, %s55
      %s72 = sphi 0, %s56
      %s76 = sphi 0, %s76
      %s78 = sphi 0, %s76
      %s79 = sphi 0, %s78
      %s93 = sphi 0, %s79
      %s97 = sphi 0, %s97
      %s99 = sphi 0, %s97
      %s100 = sphi 0, %s99
      %s114 = sphi 0, %s100
      %s118 = sphi 0, %s118
      %s120 = sphi 0, %s118
      %s121 = sphi 0, %s120
      %s135 = sphi 0, %s121
      %s139 = sphi 0, %s139
      %s141 = sphi 0, %s139
      %s142 = sphi 0, %s141
      %s156 = sphi 0, %s142
      %s160 = sphi 0, %s160
      %s162 = sphi 0, %s160
      %s163 = sphi 0, %s162
      %s177 = sphi 0, %s163
      %s183 = sphi 0, %s185
      %s186 = sphi 0, %s183
      %s187 = sphi 0, %s186
      %s203 = sphi 0, %s187
    $region4: #{tpu_custom_call.1} parent=1 // loop_header_branch
      %19 = sbr.rel (%p17) target = $region8
    $region5: #{tpu_custom_call.1} parent=1 // loop_body
      %s21 = ssub.s32 %s16, 1
      %s22 = ssub.s32 %s16, 2
      %s23 = sadd.s32 %s16, 1
      %s24 = ssub.s32 %s16, %s23
      %p25 = scmp.eq.s32.totalorder %s24, 0
      %s27 = sadd.s32 %s26, 1
      %s28 = scalar_select %p25, %s26, %s27
      %p31 = pneg %p25
      %p32 = scmp.eq.s32.totalorder %s16, 1
      %p33 = por %p31, %p32
      %p34 = scmp.ne.s32.totalorder %s26, %s29
      %p35 = scmp.eq.s32.totalorder %s16, 0
      %p36 = por %p34, %p35
      %p37 = scmp.ne.s32.totalorder %s26, %s29
      %p38 = scmp.eq.s32.totalorder %s21, 1
      %p39 = por %p37, %p38
      %p40 = scmp.ne.s32.totalorder %s29, %s30
      %p41 = scmp.eq.s32.totalorder %s21, 0
      %p42 = por %p40, %p41
      %p43 = scmp.ne.s32.totalorder %s29, %s30
      %p44 = scmp.eq.s32.totalorder %s22, 1
      %p45 = por %p43, %p44
      %p47 = scmp.ne.s32.totalorder %s30, %s46
      %p48 = scmp.eq.s32.totalorder %s22, 0
      %p49 = por %p47, %p48
      %s50 = ssub.s32 %s16, %s23
      %p51 = scmp.eq.s32.totalorder %s50, 0
      %s53 = sadd.s32 %s52, 1
      %s54 = scalar_select %p51, %s52, %s53
      %p57 = pneg %p51
      %p58 = scmp.eq.s32.totalorder %s16, 1
      %p59 = por %p57, %p58
      %p60 = scmp.ne.s32.totalorder %s52, %s55
      %p61 = scmp.eq.s32.totalorder %s16, 0
      %p62 = por %p60, %p61
      %p63 = scmp.ne.s32.totalorder %s52, %s55
      %p64 = scmp.eq.s32.totalorder %s21, 1
      %p65 = por %p63, %p64
      %p66 = scmp.ne.s32.totalorder %s55, %s56
      %p67 = scmp.eq.s32.totalorder %s21, 0
      %p68 = por %p66, %p67
      %p69 = scmp.ne.s32.totalorder %s55, %s56
      %p70 = scmp.eq.s32.totalorder %s22, 1
      %p71 = por %p69, %p70
      %p73 = scmp.ne.s32.totalorder %s56, %s72
      %p74 = scmp.eq.s32.totalorder %s22, 0
      %p75 = por %p73, %p74
      %s77 = sadd.s32 %s76, 1
      %p80 = scmp.eq.s32.totalorder %s16, 1
      %p81 = scmp.ne.s32.totalorder %s76, %s78
      %p82 = scmp.eq.s32.totalorder %s16, 0
      %p83 = por %p81, %p82
      %p84 = scmp.ne.s32.totalorder %s76, %s78
      %p85 = scmp.eq.s32.totalorder %s21, 1
      %p86 = por %p84, %p85
      %p87 = scmp.ne.s32.totalorder %s78, %s79
      %p88 = scmp.eq.s32.totalorder %s21, 0
      %p89 = por %p87, %p88
      %p90 = scmp.ne.s32.totalorder %s78, %s79
      %p91 = scmp.eq.s32.totalorder %s22, 1
      %p92 = por %p90, %p91
      %p94 = scmp.ne.s32.totalorder %s79, %s93
      %p95 = scmp.eq.s32.totalorder %s22, 0
      %p96 = por %p94, %p95
      %s98 = sadd.s32 %s97, 1
      %p101 = scmp.eq.s32.totalorder %s16, 1
      %p102 = scmp.ne.s32.totalorder %s97, %s99
      %p103 = scmp.eq.s32.totalorder %s16, 0
      %p104 = por %p102, %p103
      %p105 = scmp.ne.s32.totalorder %s97, %s99
      %p106 = scmp.eq.s32.totalorder %s21, 1
      %p107 = por %p105, %p106
      %p108 = scmp.ne.s32.totalorder %s99, %s100
      %p109 = scmp.eq.s32.totalorder %s21, 0
      %p110 = por %p108, %p109
      %p111 = scmp.ne.s32.totalorder %s99, %s100
      %p112 = scmp.eq.s32.totalorder %s22, 1
      %p113 = por %p111, %p112
      %p115 = scmp.ne.s32.totalorder %s100, %s114
      %p116 = scmp.eq.s32.totalorder %s22, 0
      %p117 = por %p115, %p116
      %s119 = sadd.s32 %s118, 1
      %p122 = scmp.eq.s32.totalorder %s16, 1
      %p123 = scmp.ne.s32.totalorder %s118, %s120
      %p124 = scmp.eq.s32.totalorder %s16, 0
      %p125 = por %p123, %p124
      %p126 = scmp.ne.s32.totalorder %s118, %s120
      %p127 = scmp.eq.s32.totalorder %s21, 1
      %p128 = por %p126, %p127
      %p129 = scmp.ne.s32.totalorder %s120, %s121
      %p130 = scmp.eq.s32.totalorder %s21, 0
      %p131 = por %p129, %p130
      %p132 = scmp.ne.s32.totalorder %s120, %s121
      %p133 = scmp.eq.s32.totalorder %s22, 1
      %p134 = por %p132, %p133
      %p136 = scmp.ne.s32.totalorder %s121, %s135
      %p137 = scmp.eq.s32.totalorder %s22, 0
      %p138 = por %p136, %p137
      %s140 = sadd.s32 %s139, 1
      %p143 = scmp.eq.s32.totalorder %s16, 1
      %p144 = scmp.ne.s32.totalorder %s139, %s141
      %p145 = scmp.eq.s32.totalorder %s16, 0
      %p146 = por %p144, %p145
      %p147 = scmp.ne.s32.totalorder %s139, %s141
      %p148 = scmp.eq.s32.totalorder %s21, 1
      %p149 = por %p147, %p148
      %p150 = scmp.ne.s32.totalorder %s141, %s142
      %p151 = scmp.eq.s32.totalorder %s21, 0
      %p152 = por %p150, %p151
      %p153 = scmp.ne.s32.totalorder %s141, %s142
      %p154 = scmp.eq.s32.totalorder %s22, 1
      %p155 = por %p153, %p154
      %p157 = scmp.ne.s32.totalorder %s142, %s156
      %p158 = scmp.eq.s32.totalorder %s22, 0
      %p159 = por %p157, %p158
      %s161 = sadd.s32 %s160, 1
      %p164 = scmp.eq.s32.totalorder %s16, 1
      %p165 = scmp.ne.s32.totalorder %s160, %s162
      %p166 = scmp.eq.s32.totalorder %s16, 0
      %p167 = por %p165, %p166
      %p168 = scmp.ne.s32.totalorder %s160, %s162
      %p169 = scmp.eq.s32.totalorder %s21, 1
      %p170 = por %p168, %p169
      %p171 = scmp.ne.s32.totalorder %s162, %s163
      %p172 = scmp.eq.s32.totalorder %s21, 0
      %p173 = por %p171, %p172
      %p174 = scmp.ne.s32.totalorder %s162, %s163
      %p175 = scmp.eq.s32.totalorder %s22, 1
      %p176 = por %p174, %p175
      %p178 = scmp.ne.s32.totalorder %s163, %s177
      %p179 = scmp.eq.s32.totalorder %s22, 0
      %p180 = por %p178, %p179
      %s181 = ssub.s32 %s16, %s23
      %p182 = scmp.eq.s32.totalorder %s181, 0
      %s184 = sadd.s32 %s183, 1
      %s185 = scalar_select %p182, %s183, %s184
      %p188 = pneg %p182
      %p189 = scmp.eq.s32.totalorder %s16, 1
      %p190 = por %p188, %p189
      %p191 = scmp.ne.s32.totalorder %s183, %s186
      %p192 = scmp.eq.s32.totalorder %s16, 0
      %p193 = por %p191, %p192
      %p194 = scmp.ne.s32.totalorder %s183, %s186
      %p195 = scmp.eq.s32.totalorder %s21, 1
      %p196 = por %p194, %p195
      %p197 = scmp.ne.s32.totalorder %s186, %s187
      %p198 = scmp.eq.s32.totalorder %s21, 0
      %p199 = por %p197, %p198
      %p200 = scmp.ne.s32.totalorder %s186, %s187
      %p201 = scmp.eq.s32.totalorder %s22, 1
      %p202 = por %p200, %p201
      %p204 = scmp.ne.s32.totalorder %s187, %s203
      %p205 = scmp.eq.s32.totalorder %s22, 0
      %p206 = por %p204, %p205
      %p207 = scmp.le.s32.totalorder 1, %s16
      %p208 = scmp.lt.s32.totalorder %s16, 3
      %p209 = pnand %p207, %p208
      %p210 = pneg %p209
      // Predicated region
      $region9: #{tpu_custom_call.1} parent=5 // pred_check
        _
      $region10: #{tpu_custom_call.1} parent=5 // pred_check_branch
        %212 = sbr.rel (%p209) target = $region12
      $region11: #{tpu_custom_call.1} parent=5 // pred_region
        %s213 = ssub.s32 %s16, 1
        // Predicated region
        $region13: #{tpu_custom_call.1} parent=11 // pred_check
          %p214 = pneg %p89
        $region14: #{tpu_custom_call.1} parent=11 // pred_check_branch
          %216 = sbr.rel (%p214) target = $region16
        $region15: #{tpu_custom_call.1} parent=11 // pred_region
          _
        $region16: #{tpu_custom_call.1} parent=11 // pred_fallthru
          _
        // Predicated region
        $region17: #{tpu_custom_call.1} parent=11 // pred_check
          %p217 = pneg %p110
        $region18: #{tpu_custom_call.1} parent=11 // pred_check_branch
          %219 = sbr.rel (%p217) target = $region20
        $region19: #{tpu_custom_call.1} parent=11 // pred_region
          _
        $region20: #{tpu_custom_call.1} parent=11 // pred_fallthru
          _
        // Predicated region
        $region21: #{tpu_custom_call.1} parent=11 // pred_check
          %p220 = pneg %p131
        $region22: #{tpu_custom_call.1} parent=11 // pred_check_branch
          %222 = sbr.rel (%p220) target = $region24
        $region23: #{tpu_custom_call.1} parent=11 // pred_region
          _
        $region24: #{tpu_custom_call.1} parent=11 // pred_fallthru
          _
        // Predicated region
        $region25: #{tpu_custom_call.1} parent=11 // pred_check
          %p223 = pneg %p152
        $region26: #{tpu_custom_call.1} parent=11 // pred_check_branch
          %225 = sbr.rel (%p223) target = $region28
        $region27: #{tpu_custom_call.1} parent=11 // pred_region
          _
        $region28: #{tpu_custom_call.1} parent=11 // pred_fallthru
          _
        // Predicated region
        $region29: #{tpu_custom_call.1} parent=11 // pred_check
          %p226 = pneg %p173
        $region30: #{tpu_custom_call.1} parent=11 // pred_check_branch
          %228 = sbr.rel (%p226) target = $region32
        $region31: #{tpu_custom_call.1} parent=11 // pred_region
          _
        $region32: #{tpu_custom_call.1} parent=11 // pred_fallthru
          _
      $region12: #{tpu_custom_call.1} parent=5 // pred_fallthru
        _
      %p229 = scmp.lt.s32.totalorder %s16, 2
      // Predicated region
      $region33: #{tpu_custom_call.1} parent=5 // pred_check
        %p230 = pneg %p229
      $region34: #{tpu_custom_call.1} parent=5 // pred_check_branch
        %232 = sbr.rel (%p230) target = $region36
      $region35: #{tpu_custom_call.1} parent=5 // pred_region
        // Predicated region
        $region37: #{tpu_custom_call.1} parent=35 // pred_check
          %p233 = pneg %p36
        $region38: #{tpu_custom_call.1} parent=35 // pred_check_branch
          %235 = sbr.rel (%p233) target = $region40
        $region39: #{tpu_custom_call.1} parent=35 // pred_region
          %p236 = scmp.lt.s32.totalorder %s16, 1
          %s237 = scalar_select %p236, %s16, 1
          %s238 = smul.addr %s237, 8
          %s239 = scalar_lea.vmem %s0, %s238
        $region40: #{tpu_custom_call.1} parent=35 // pred_fallthru
          _
        // Predicated region
        $region41: #{tpu_custom_call.1} parent=35 // pred_check
          %p240 = pneg %p62
        $region42: #{tpu_custom_call.1} parent=35 // pred_check_branch
          %242 = sbr.rel (%p240) target = $region44
        $region43: #{tpu_custom_call.1} parent=35 // pred_region
          %p243 = scmp.lt.s32.totalorder %s16, 1
          %s244 = scalar_select %p243, %s16, 1
          %s245 = smul.addr %s244, 8
          %s246 = scalar_lea.vmem %s1, %s245
        $region44: #{tpu_custom_call.1} parent=35 // pred_fallthru
          _
      $region36: #{tpu_custom_call.1} parent=5 // pred_fallthru
        _
      %p247 = scmp.le.s32.totalorder 1, %s16
      %p248 = scmp.lt.s32.totalorder %s16, 3
      %p249 = pnand %p247, %p248
      %p250 = pneg %p249
      // Predicated region
      $region45: #{tpu_custom_call.1} parent=5 // pred_check
        _
      $region46: #{tpu_custom_call.1} parent=5 // pred_check_branch
        %252 = sbr.rel (%p249) target = $region48
      $region47: #{tpu_custom_call.1} parent=5 // pred_region
        %s253 = ssub.s32 %s16, 1
        %p254 = scmp.lt.s32.totalorder %s21, 1
        %s255 = scalar_select %p254, %s21, 1
        %s256 = smul.addr %s255, 8
        %s257 = scalar_lea.vmem %s0, %s256
        %p258 = pneg %p42
        %p259 = pneg %p39
        %p260 = scmp.lt.s32.totalorder %s21, 1
        %s261 = scalar_select %p260, %s21, 1
        %s262 = smul.addr %s261, 8
        %s263 = scalar_lea.vmem %s1, %s262
        %p264 = pneg %p68
        %p265 = pneg %p65
        %p266 = pneg %p89
        %p267 = pneg %p86
        %p268 = pneg %p110
        %p269 = pneg %p107
        %p270 = pneg %p131
        %p271 = pneg %p128
        %p272 = pneg %p152
        %p273 = pneg %p149
        %p274 = pneg %p173
        %p275 = pneg %p170
        %p276 = pneg %p199
        %p277 = pneg %p196
        %s278 = sand.u32 %s186, 1
        %s279 = scalar_lea.sflag [#allocation3], %s278
        %s280 = sand.u32 %s186, 1
        %s281 = smul.addr %s280, 8
        %s282 = scalar_lea.vmem [#allocation2], %s281
        %p283 = scmp.lt.s32.totalorder %s21, 1
        %s284 = scalar_select %p283, %s21, 1
        %s285 = smul.addr %s284, 8
        %s286 = scalar_lea.vmem %s0, %s285
        %p287 = scmp.lt.s32.totalorder %s21, 1
        %s288 = scalar_select %p287, %s21, 1
        %s289 = smul.addr %s288, 8
        %s290 = scalar_lea.vmem %s1, %s289
        %v291 = vld [vmem:[%s2] sm:$0xff]
        %v292 = vld [vmem:[%s2 + $0x8] sm:$0xff]
        %v293 = vld [vmem:[%s2 + $0x10] sm:$0xff]
        %v294 = vld [vmem:[%s2 + $0x18] sm:$0xff]
        %v295 = vld [vmem:[%s2 + $0x20] sm:$0xff]
        %v296 = vld [vmem:[%s2 + $0x28] sm:$0xff]
        %v297 = vld [vmem:[%s2 + $0x30] sm:$0xff]
        %v298 = vld [vmem:[%s2 + $0x38] sm:$0xff]
        %v299 = vld [vmem:[%s3] sm:$0xff]
        %v300 = vld [vmem:[%s3 + $0x8] sm:$0xff]
        %v301 = vld [vmem:[%s3 + $0x10] sm:$0xff]
        %v302 = vld [vmem:[%s3 + $0x18] sm:$0xff]
        %v303 = vld [vmem:[%s4] sm:$0x1]
        %v305 = vlaneseq
        %v306 = vshrl.u32 %v305, 7
        %v307 = vsub.s32 0, %v306
        %v308 = vrot.slane %v303, %v307
        %vm310 = vcmask 261120
        %v312 = vsel %vm310, %v291, 0
        %v315 = vsel %vm310, %v292, 0
        %v318 = vsel %vm310, %v293, 0
        %v321 = vsel %vm310, %v294, 0
        %v324 = vsel %vm310, %v295, 0
        %v327 = vsel %vm310, %v296, 0
        %v330 = vsel %vm310, %v297, 0
        %v333 = vsel %vm310, %v298, 0
        %335 = vmatprep.subr.mxu0 0.0
        %336 = vmatpush1.msra.mxu0 %v299
        %337 = vmatprep.subr.mxu0 0.0
        %338 = vmatpush1.msra.mxu0 %v300
        %339 = vmatprep.subr.mxu0 0.0
        %340 = vmatpush1.msra.mxu0 %v301
        %341 = vmatprep.subr.mxu0 0.0
        %342 = vmatpush1.msra.mxu0 %v302
        %343 = vmatprep.subr.mxu0 0.0
        %344 = vmatpush1.msra.mxu0 0.0
        %345 = vmatprep.subr.mxu0 0.0
        %346 = vmatpush1.msra.mxu0 0.0
        %347 = vmatprep.subr.mxu0 0.0
        %348 = vmatpush1.msra.mxu0 0.0
        %349 = vmatprep.subr.mxu0 0.0
        %350 = vmatpush1.msra.mxu0 0.0
        %351 = vmatprep.subr.mxu0 0.0
        %352 = vmatpush1.msra.mxu0 0.0
        %353 = vmatprep.subr.mxu0 0.0
        %354 = vmatpush1.msra.mxu0 0.0
        %355 = vmatprep.subr.mxu0 0.0
        %356 = vmatpush1.msra.mxu0 0.0
        %357 = vmatprep.subr.mxu0 0.0
        %358 = vmatpush1.msra.mxu0 0.0
        %359 = vmatprep.subr.mxu0 0.0
        %360 = vmatpush1.msra.mxu0 0.0
        %361 = vmatprep.subr.mxu0 0.0
        %362 = vmatpush1.msra.mxu0 0.0
        %363 = vmatprep.subr.mxu0 0.0
        %364 = vmatpush1.msra.mxu0 0.0
        %365 = vmatprep.subr.mxu0 0.0
        %366 = vmatpush1.msra.mxu0 0.0
        %367 = vmatprep.subr.mxu0 0.0
        %368 = vmatpush1.msra.mxu0 0.0
        %369 = vmatprep.subr.mxu0 0.0
        %370 = vmatpush1.msra.mxu0 0.0
        %371 = vmatprep.subr.mxu0 0.0
        %372 = vmatpush1.msra.mxu0 0.0
        %373 = vmatprep.subr.mxu0 0.0
        %374 = vmatpush1.msra.mxu0 0.0
        %375 = vmatprep.subr.mxu0 0.0
        %376 = vmatpush1.msra.mxu0 0.0
        %377 = vmatprep.subr.mxu0 0.0
        %378 = vmatpush1.msra.mxu0 0.0
        %379 = vmatprep.subr.mxu0 0.0
        %380 = vmatpush1.msra.mxu0 0.0
        %381 = vmatprep.subr.mxu0 0.0
        %382 = vmatpush1.msra.mxu0 0.0
        %383 = vmatprep.subr.mxu0 0.0
        %384 = vmatpush1.msra.mxu0 0.0
        %385 = vmatprep.subr.mxu0 0.0
        %386 = vmatpush1.msra.mxu0 0.0
        %387 = vmatprep.subr.mxu0 0.0
        %388 = vmatpush1.msra.mxu0 0.0
        %389 = vmatprep.subr.mxu0 0.0
        %390 = vmatpush1.msra.mxu0 0.0
        %391 = vmatprep.subr.mxu0 0.0
        %392 = vmatpush1.msra.mxu0 0.0
        %393 = vmatprep.subr.mxu0 0.0
        %394 = vmatpush1.msra.mxu0 0.0
        %395 = vmatprep.subr.mxu0 0.0
        %396 = vmatpush1.msra.mxu0 0.0
        %397 = vmatprep.subr.mxu0 0.0
        %398 = vmatpush1.msra.mxu0 0.0
        %399 = vmatprep.mubr.f32.mxu0 0.0
        %400 = vmatmul.mubr.f32.gmra.mrb[0].mxu0 %v312
        %v401 = vpop.f32.mrb[0].mxu0
        %v402 = vadd.f32 %v308, %v401
        %v403 = vpop.f32.mrb[0].mxu0
        %404 = vmatprep.mubr.f32.mxu0 0.0
        %405 = vmatmul.mubr.f32.gmra.mrb[0].mxu0 %v315
        %v406 = vpop.f32.mrb[0].mxu0
        %v407 = vadd.f32 %v308, %v406
        %v408 = vpop.f32.mrb[0].mxu0
        %409 = vmatprep.mubr.f32.mxu0 0.0
        %410 = vmatmul.mubr.f32.gmra.mrb[0].mxu0 %v318
        %v411 = vpop.f32.mrb[0].mxu0
        %v412 = vadd.f32 %v308, %v411
        %v413 = vpop.f32.mrb[0].mxu0
        %414 = vmatprep.mubr.f32.mxu0 0.0
        %415 = vmatmul.mubr.f32.gmra.mrb[0].mxu0 %v321
        %v416 = vpop.f32.mrb[0].mxu0
        %v417 = vadd.f32 %v308, %v416
        %v418 = vpop.f32.mrb[0].mxu0
        %419 = vmatprep.mubr.f32.mxu0 0.0
        %420 = vmatmul.mubr.f32.gmra.mrb[0].mxu0 %v324
        %v421 = vpop.f32.mrb[0].mxu0
        %v422 = vadd.f32 %v308, %v421
        %v423 = vpop.f32.mrb[0].mxu0
        %424 = vmatprep.mubr.f32.mxu0 0.0
        %425 = vmatmul.mubr.f32.gmra.mrb[0].mxu0 %v327
        %v426 = vpop.f32.mrb[0].mxu0
        %v427 = vadd.f32 %v308, %v426
        %v428 = vpop.f32.mrb[0].mxu0
        %429 = vmatprep.mubr.f32.mxu0 0.0
        %430 = vmatmul.mubr.f32.gmra.mrb[0].mxu0 %v330
        %v431 = vpop.f32.mrb[0].mxu0
        %v432 = vadd.f32 %v308, %v431
        %v433 = vpop.f32.mrb[0].mxu0
        %434 = vmatprep.mubr.f32.mxu0 0.0
        %435 = vmatmul.mubr.f32.gmra.mrb[0].mxu0 %v333
        %v436 = vpop.f32.mrb[0].mxu0
        %v437 = vadd.f32 %v308, %v436
        %v438 = vpop.f32.mrb[0].mxu0
        %439 = vdwg.mxu0
        %v440 = vmax.f32 %v402, 0.0
        %v441 = vmax.f32 %v407, 0.0
        %v442 = vmax.f32 %v412, 0.0
        %v443 = vmax.f32 %v417, 0.0
        %v444 = vmax.f32 %v422, 0.0
        %v445 = vmax.f32 %v427, 0.0
        %v446 = vmax.f32 %v432, 0.0
        %v447 = vmax.f32 %v437, 0.0
        %v448 = vld [vmem:[%s5] sm:$0xff]
        %v449 = vld [vmem:[%s5 + $0x8] sm:$0xff]
        %v450 = vld [vmem:[%s5 + $0x10] sm:$0xff]
        %v451 = vld [vmem:[%s5 + $0x18] sm:$0xff]
        %v452 = vld [vmem:[%s6] sm:$0x1]
        %v454 = vlaneseq
        %v455 = vshrl.u32 %v454, 7
        %v456 = vsub.s32 0, %v455
        %v457 = vrot.slane %v452, %v456
        %v460 = vsel %vm310, %v440, 0
        %v463 = vsel %vm310, %v441, 0
        %v466 = vsel %vm310, %v442, 0
        %v469 = vsel %vm310, %v443, 0
        %v472 = vsel %vm310, %v444, 0
        %v475 = vsel %vm310, %v445, 0
        %v478 = vsel %vm310, %v446, 0
        %v481 = vsel %vm310, %v447, 0
        %483 = vmatprep.subr.mxu0 0.0
        %484 = vmatpush1.msra.mxu0 %v448
        %485 = vmatprep.subr.mxu0 0.0
        %486 = vmatpush1.msra.mxu0 %v449
        %487 = vmatprep.subr.mxu0 0.0
        %488 = vmatpush1.msra.mxu0 %v450
        %489 = vmatprep.subr.mxu0 0.0
        %490 = vmatpush1.msra.mxu0 %v451
        %491 = vmatprep.subr.mxu0 0.0
        %492 = vmatpush1.msra.mxu0 0.0
        %493 = vmatprep.subr.mxu0 0.0
        %494 = vmatpush1.msra.mxu0 0.0
        %495 = vmatprep.subr.mxu0 0.0
        %496 = vmatpush1.msra.mxu0 0.0
        %497 = vmatprep.subr.mxu0 0.0
        %498 = vmatpush1.msra.mxu0 0.0
        %499 = vmatprep.subr.mxu0 0.0
        %500 = vmatpush1.msra.mxu0 0.0
        %501 = vmatprep.subr.mxu0 0.0
        %502 = vmatpush1.msra.mxu0 0.0
        %503 = vmatprep.subr.mxu0 0.0
        %504 = vmatpush1.msra.mxu0 0.0
        %505 = vmatprep.subr.mxu0 0.0
        %506 = vmatpush1.msra.mxu0 0.0
        %507 = vmatprep.subr.mxu0 0.0
        %508 = vmatpush1.msra.mxu0 0.0
        %509 = vmatprep.subr.mxu0 0.0
        %510 = vmatpush1.msra.mxu0 0.0
        %511 = vmatprep.subr.mxu0 0.0
        %512 = vmatpush1.msra.mxu0 0.0
        %513 = vmatprep.subr.mxu0 0.0
        %514 = vmatpush1.msra.mxu0 0.0
        %515 = vmatprep.subr.mxu0 0.0
        %516 = vmatpush1.msra.mxu0 0.0
        %517 = vmatprep.subr.mxu0 0.0
        %518 = vmatpush1.msra.mxu0 0.0
        %519 = vmatprep.subr.mxu0 0.0
        %520 = vmatpush1.msra.mxu0 0.0
        %521 = vmatprep.subr.mxu0 0.0
        %522 = vmatpush1.msra.mxu0 0.0
        %523 = vmatprep.subr.mxu0 0.0
        %524 = vmatpush1.msra.mxu0 0.0
        %525 = vmatprep.subr.mxu0 0.0
        %526 = vmatpush1.msra.mxu0 0.0
        %527 = vmatprep.subr.mxu0 0.0
        %528 = vmatpush1.msra.mxu0 0.0
        %529 = vmatprep.subr.mxu0 0.0
        %530 = vmatpush1.msra.mxu0 0.0
        %531 = vmatprep.subr.mxu0 0.0
        %532 = vmatpush1.msra.mxu0 0.0
        %533 = vmatprep.subr.mxu0 0.0
        %534 = vmatpush1.msra.mxu0 0.0
        %535 = vmatprep.subr.mxu0 0.0
        %536 = vmatpush1.msra.mxu0 0.0
        %537 = vmatprep.subr.mxu0 0.0
        %538 = vmatpush1.msra.mxu0 0.0
        %539 = vmatprep.subr.mxu0 0.0
        %540 = vmatpush1.msra.mxu0 0.0
        %541 = vmatprep.subr.mxu0 0.0
        %542 = vmatpush1.msra.mxu0 0.0
        %543 = vmatprep.subr.mxu0 0.0
        %544 = vmatpush1.msra.mxu0 0.0
        %545 = vmatprep.subr.mxu0 0.0
        %546 = vmatpush1.msra.mxu0 0.0
        %547 = vmatprep.mubr.f32.mxu0 0.0
        %548 = vmatmul.mubr.f32.gmra.mrb[0].mxu0 %v460
        %v549 = vpop.f32.mrb[0].mxu0
        %v550 = vadd.f32 %v457, %v549
        %v551 = vpop.f32.mrb[0].mxu0
        %552 = vmatprep.mubr.f32.mxu0 0.0
        %553 = vmatmul.mubr.f32.gmra.mrb[0].mxu0 %v463
        %v554 = vpop.f32.mrb[0].mxu0
        %v555 = vadd.f32 %v457, %v554
        %v556 = vpop.f32.mrb[0].mxu0
        %557 = vmatprep.mubr.f32.mxu0 0.0
        %558 = vmatmul.mubr.f32.gmra.mrb[0].mxu0 %v466
        %v559 = vpop.f32.mrb[0].mxu0
        %v560 = vadd.f32 %v457, %v559
        %v561 = vpop.f32.mrb[0].mxu0
        %562 = vmatprep.mubr.f32.mxu0 0.0
        %563 = vmatmul.mubr.f32.gmra.mrb[0].mxu0 %v469
        %v564 = vpop.f32.mrb[0].mxu0
        %v565 = vadd.f32 %v457, %v564
        %v566 = vpop.f32.mrb[0].mxu0
        %567 = vmatprep.mubr.f32.mxu0 0.0
        %568 = vmatmul.mubr.f32.gmra.mrb[0].mxu0 %v472
        %v569 = vpop.f32.mrb[0].mxu0
        %v570 = vadd.f32 %v457, %v569
        %v571 = vpop.f32.mrb[0].mxu0
        %572 = vmatprep.mubr.f32.mxu0 0.0
        %573 = vmatmul.mubr.f32.gmra.mrb[0].mxu0 %v475
        %v574 = vpop.f32.mrb[0].mxu0
        %v575 = vadd.f32 %v457, %v574
        %v576 = vpop.f32.mrb[0].mxu0
        %577 = vmatprep.mubr.f32.mxu0 0.0
        %578 = vmatmul.mubr.f32.gmra.mrb[0].mxu0 %v478
        %v579 = vpop.f32.mrb[0].mxu0
        %v580 = vadd.f32 %v457, %v579
        %v581 = vpop.f32.mrb[0].mxu0
        %582 = vmatprep.mubr.f32.mxu0 0.0
        %583 = vmatmul.mubr.f32.gmra.mrb[0].mxu0 %v481
        %v584 = vpop.f32.mrb[0].mxu0
        %v585 = vadd.f32 %v457, %v584
        %v586 = vpop.f32.mrb[0].mxu0
        %587 = vdwg.mxu0
        %vm588 = vcmask 392192
        %v589 = vsel %vm588, %v550, -inf
        %590 = vmax.xlane.f32.xlu0 %v589
        %v591 = vpop.xlane.xlu0 %590
        %v592 = vsel %vm588, %v555, -inf
        %593 = vmax.xlane.f32.xlu0 %v592
        %v594 = vpop.xlane.xlu0 %593
        %v595 = vsel %vm588, %v560, -inf
        %596 = vmax.xlane.f32.xlu0 %v595
        %v597 = vpop.xlane.xlu0 %596
        %v598 = vsel %vm588, %v565, -inf
        %599 = vmax.xlane.f32.xlu0 %v598
        %v600 = vpop.xlane.xlu0 %599
        %v601 = vsel %vm588, %v570, -inf
        %602 = vmax.xlane.f32.xlu0 %v601
        %v603 = vpop.xlane.xlu0 %602
        %v604 = vsel %vm588, %v575, -inf
        %605 = vmax.xlane.f32.xlu0 %v604
        %v606 = vpop.xlane.xlu0 %605
        %v607 = vsel %vm588, %v580, -inf
        %608 = vmax.xlane.f32.xlu0 %v607
        %v609 = vpop.xlane.xlu0 %608
        %v610 = vsel %vm588, %v585, -inf
        %611 = vmax.xlane.f32.xlu0 %v610
        %v612 = vpop.xlane.xlu0 %611
        %v613 = vsub.f32 %v550, %v591
        %v614 = vsub.f32 %v555, %v594
        %v615 = vsub.f32 %v560, %v597
        %v616 = vsub.f32 %v565, %v600
        %v617 = vsub.f32 %v570, %v603
        %v618 = vsub.f32 %v575, %v606
        %v619 = vsub.f32 %v580, %v609
        %v620 = vsub.f32 %v585, %v612
        %v621 = vmul.f32 %v613, 1.442695
        %v622 = vpow.pop %v621
        %v623 = vmul.f32 %v614, 1.442695
        %v624 = vpow.pop %v623
        %v625 = vmul.f32 %v615, 1.442695
        %v626 = vpow.pop %v625
        %v627 = vmul.f32 %v616, 1.442695
        %v628 = vpow.pop %v627
        %v629 = vmul.f32 %v617, 1.442695
        %v630 = vpow.pop %v629
        %v631 = vmul.f32 %v618, 1.442695
        %v632 = vpow.pop %v631
        %v633 = vmul.f32 %v619, 1.442695
        %v634 = vpow.pop %v633
        %v635 = vmul.f32 %v620, 1.442695
        %v636 = vpow.pop %v635
        %v637 = vsel %vm588, %v622, 0.0
        %638 = vadd.xlane.f32.xlu0 %v637
        %v639 = vpop.xlane.xlu0 %638
        %v640 = vsel %vm588, %v624, 0.0
        %641 = vadd.xlane.f32.xlu0 %v640
        %v642 = vpop.xlane.xlu0 %641
        %v643 = vsel %vm588, %v626, 0.0
        %644 = vadd.xlane.f32.xlu0 %v643
        %v645 = vpop.xlane.xlu0 %644
        %v646 = vsel %vm588, %v628, 0.0
        %647 = vadd.xlane.f32.xlu0 %v646
        %v648 = vpop.xlane.xlu0 %647
        %v649 = vsel %vm588, %v630, 0.0
        %650 = vadd.xlane.f32.xlu0 %v649
        %v651 = vpop.xlane.xlu0 %650
        %v652 = vsel %vm588, %v632, 0.0
        %653 = vadd.xlane.f32.xlu0 %v652
        %v654 = vpop.xlane.xlu0 %653
        %v655 = vsel %vm588, %v634, 0.0
        %656 = vadd.xlane.f32.xlu0 %v655
        %v657 = vpop.xlane.xlu0 %656
        %v658 = vsel %vm588, %v636, 0.0
        %659 = vadd.xlane.f32.xlu0 %v658
        %v660 = vpop.xlane.xlu0 %659
        %v661 = vrcp.pop %v639
        %v662 = vmul.f32 %v622, %v661
        %v663 = vrcp.pop %v642
        %v664 = vmul.f32 %v624, %v663
        %v665 = vrcp.pop %v645
        %v666 = vmul.f32 %v626, %v665
        %v667 = vrcp.pop %v648
        %v668 = vmul.f32 %v628, %v667
        %v669 = vrcp.pop %v651
        %v670 = vmul.f32 %v630, %v669
        %v671 = vrcp.pop %v654
        %v672 = vmul.f32 %v632, %v671
        %v673 = vrcp.pop %v657
        %v674 = vmul.f32 %v634, %v673
        %v675 = vrcp.pop %v660
        %v676 = vmul.f32 %v636, %v675
        %v677 = vld [vmem:[%s286] sm:$0xff]
        %v678 = vlaneseq
        %v679 = vand.u32 %v678, 127
        %680 = vset.pattern.permute.xlu0 0
        %681 = vperm.xlu0 %680, %v677
        %v682 = vpop.permute.xlu0 %681
        %vm683 = vcmp.eq.s32.totalorder %v679, %v682
        %v684 = vld [vmem:[%s290] sm:$0xff]
        %686 = vset.pattern.permute.xlu0 0
        %687 = vperm.xlu0 %686, %v684
        %v688 = vpop.permute.xlu0 %687
        %v690 = vsel %vm683, %v688, 0.0
        %vm691 = vcmask 523264
        %v693 = vsel %vm691, %v690, 0
        %695 = vmatprep.subr.mxu0 0.0
        %696 = vmatpush1.msra.mxu0 %v662
        %697 = vmatprep.subr.mxu0 0.0
        %698 = vmatpush1.msra.mxu0 %v664
        %699 = vmatprep.subr.mxu0 0.0
        %700 = vmatpush1.msra.mxu0 %v666
        %701 = vmatprep.subr.mxu0 0.0
        %702 = vmatpush1.msra.mxu0 %v668
        %703 = vmatprep.subr.mxu0 0.0
        %704 = vmatpush1.msra.mxu0 %v670
        %705 = vmatprep.subr.mxu0 0.0
        %706 = vmatpush1.msra.mxu0 %v672
        %707 = vmatprep.subr.mxu0 0.0
        %708 = vmatpush1.msra.mxu0 %v674
        %709 = vmatprep.subr.mxu0 0.0
        %710 = vmatpush1.msra.mxu0 %v676
        %711 = vmatprep.subr.mxu0 0.0
        %712 = vmatpush1.msra.mxu0 0.0
        %713 = vmatprep.subr.mxu0 0.0
        %714 = vmatpush1.msra.mxu0 0.0
        %715 = vmatprep.subr.mxu0 0.0
        %716 = vmatpush1.msra.mxu0 0.0
        %717 = vmatprep.subr.mxu0 0.0
        %718 = vmatpush1.msra.mxu0 0.0
        %719 = vmatprep.subr.mxu0 0.0
        %720 = vmatpush1.msra.mxu0 0.0
        %721 = vmatprep.subr.mxu0 0.0
        %722 = vmatpush1.msra.mxu0 0.0
        %723 = vmatprep.subr.mxu0 0.0
        %724 = vmatpush1.msra.mxu0 0.0
        %725 = vmatprep.subr.mxu0 0.0
        %726 = vmatpush1.msra.mxu0 0.0
        %727 = vmatprep.subr.mxu0 0.0
        %728 = vmatpush1.msra.mxu0 0.0
        %729 = vmatprep.subr.mxu0 0.0
        %730 = vmatpush1.msra.mxu0 0.0
        %731 = vmatprep.subr.mxu0 0.0
        %732 = vmatpush1.msra.mxu0 0.0
        %733 = vmatprep.subr.mxu0 0.0
        %734 = vmatpush1.msra.mxu0 0.0
        %735 = vmatprep.subr.mxu0 0.0
        %736 = vmatpush1.msra.mxu0 0.0
        %737 = vmatprep.subr.mxu0 0.0
        %738 = vmatpush1.msra.mxu0 0.0
        %739 = vmatprep.subr.mxu0 0.0
        %740 = vmatpush1.msra.mxu0 0.0
        %741 = vmatprep.subr.mxu0 0.0
        %742 = vmatpush1.msra.mxu0 0.0
        %743 = vmatprep.subr.mxu0 0.0
        %744 = vmatpush1.msra.mxu0 0.0
        %745 = vmatprep.subr.mxu0 0.0
        %746 = vmatpush1.msra.mxu0 0.0
        %747 = vmatprep.subr.mxu0 0.0
        %748 = vmatpush1.msra.mxu0 0.0
        %749 = vmatprep.subr.mxu0 0.0
        %750 = vmatpush1.msra.mxu0 0.0
        %751 = vmatprep.subr.mxu0 0.0
        %752 = vmatpush1.msra.mxu0 0.0
        %753 = vmatprep.subr.mxu0 0.0
        %754 = vmatpush1.msra.mxu0 0.0
        %755 = vmatprep.subr.mxu0 0.0
        %756 = vmatpush1.msra.mxu0 0.0
        %757 = vmatprep.subr.mxu0 0.0
        %758 = vmatpush1.msra.mxu0 0.0
        %759 = vmatprep.mubr.f32.mxu0 0.0
        %760 = vmatmul.mubr.f32.gmra.mrb[0].mxu0 %v693
        %v761 = vpop.f32.mrb[0].mxu0
        %v762 = vadd.f32 0.0, %v761
        %v763 = vpop.f32.mrb[0].mxu0
        %764 = vdwg.mxu0
        %765 = vst.msk [vmem:[%s282] sm:$0xff] %vm588, %v762
        %s766 = sand.u32 %s186, 1
        %s767 = scalar_lea.sflag [#allocation3], %s766
        %s768 = sand.u32 %s186, 1
        %s769 = smul.addr %s768, 8
        %s770 = scalar_lea.vmem [#allocation2], %s769
        // Predicated region
        $region49: #{tpu_custom_call.1} parent=47 // pred_check
          %p771 = pneg %p196
        $region50: #{tpu_custom_call.1} parent=47 // pred_check_branch
          %773 = sbr.rel (%p771) target = $region52
        $region51: #{tpu_custom_call.1} parent=47 // pred_region
          %s775 = ssub.s32 128, 128
          %776 = vsyncadd %s767, %s775
          %s777 = smul.addr %s21, 128
          %s778 = scalar_lea.hbm %s7, %s777
          %s780 = sshll.u32 %s770, 4
          %s781 = int_to_ptr.vmem [resolvable:$true] %s780
          %783 = dma.vmem_to_hbm [thread:$0]  %s781, 128, %s778, %s767
        $region52: #{tpu_custom_call.1} parent=47 // pred_fallthru
          _
      $region48: #{tpu_custom_call.1} parent=5 // pred_fallthru
        _
      %p784 = scmp.le.s32.totalorder 2, %s16
      // Predicated region
      $region53: #{tpu_custom_call.1} parent=5 // pred_check
        %p785 = pneg %p784
      $region54: #{tpu_custom_call.1} parent=5 // pred_check_branch
        %787 = sbr.rel (%p785) target = $region56
      $region55: #{tpu_custom_call.1} parent=5 // pred_region
        %s788 = ssub.s32 %s16, 2
        // Predicated region
        $region57: #{tpu_custom_call.1} parent=55 // pred_check
          %p789 = pneg %p202
        $region58: #{tpu_custom_call.1} parent=55 // pred_check_branch
          %791 = sbr.rel (%p789) target = $region60
        $region59: #{tpu_custom_call.1} parent=55 // pred_region
          %s792 = sand.u32 %s187, 1
          %s793 = scalar_lea.sflag [#allocation3], %s792
          %s794 = sand.u32 %s187, 1
          %s795 = smul.addr %s794, 8
          %s796 = scalar_lea.vmem [#allocation2], %s795
          %797 = dma.done %s793, 128
        $region60: #{tpu_custom_call.1} parent=55 // pred_fallthru
          _
      $region56: #{tpu_custom_call.1} parent=5 // pred_fallthru
        _
    $region6: #{tpu_custom_call.1} parent=1 // loop_footer
      %s20 = sadd.s32 1, %s16
    $region7: #{tpu_custom_call.1} parent=1 // loop_footer_branch
      %15 = sbr.rel target = $region3
    $region8: #{tpu_custom_call.1} parent=1 // loop_exit
      _
    %798 = vsyncpa [#allocation3], 1
    %s799 = scalar_lea.sflag [#allocation3], 1
    %800 = vsyncpa %s799, 1

</llo_original>
